<compile_context>
chip_gen: v7x
topology: tpu7x:2x2x1
jax: 0.10.0
libtpu: 0.0.40
codegen_flags: <defaults>
</compile_context>

<pallas_src>
import functools

import jax
import jax.numpy as jnp
from jax import lax
from jax.experimental import pallas as pl
from jax.experimental.pallas import tpu as pltpu


def _targeted_gather_kernel(slab_ref, loc_ref, inp_hbm, picked_ref, buf, sem,
                            *, rows, row_tile, slab_width, slab_aligned):
    """Gather inp_hbm[row, seq[row]] for a block of `row_tile` rows.

    slab_ref : SMEM (R_pad,) int32   -- per-row slab start (scalar prefetch)
    loc_ref  : VMEM (TR, 1) int32    -- per-row lane offset inside its slab
    inp_hbm  : HBM  (R, V)           -- log-probs, never copied in full
    picked_ref: VMEM (TR, 1) f32 out -- gathered log-prob per row
    buf      : VMEM (TR, SLAB) scratch, sem: single DMA semaphore
    """
    b = pl.program_id(0)
    row0 = b * row_tile

    # Phase 1: issue one small DMA per row (all share one semaphore).
    @pl.loop(0, row_tile)
    def _issue(i):
        r = row0 + i
        r_src = jnp.minimum(r, rows - 1)      # padded rows read a valid HBM row
        start = slab_ref[r]                   # padded entries are 0
        if slab_aligned:
            start = pl.multiple_of(start, slab_width)
        pltpu.make_async_copy(
            inp_hbm.at[pl.ds(r_src, 1), pl.ds(start, slab_width)],
            buf.at[pl.ds(i, 1)],
            sem,
        ).start()

    # Phase 2: drain all copies (identical sizes, shared semaphore).
    @pl.loop(0, row_tile)
    def _drain(i):
        pltpu.make_async_copy(
            inp_hbm.at[pl.ds(0, 1), pl.ds(0, slab_width)],
            buf.at[pl.ds(i, 1)],
            sem,
        ).wait()

    # Phase 3: vectorized lane select + reduce (native dtype; <=1 hit per row,
    # so the sum is exact and only the tiny result is cast to f32).
    lanes = lax.broadcasted_iota(jnp.int32, (row_tile, slab_width), 1)
    hit = lanes == loc_ref[...]                           # (TR, SLAB) vs (TR, 1)
    slabs = buf[...]
    picked = jnp.sum(jnp.where(hit, slabs, jnp.zeros_like(slabs)),
                     axis=1, keepdims=True)
    picked_ref[...] = picked.astype(jnp.float32)


def _pick_row_tile(rows):
    """Rows per block: multiple of 8, and >= 2 blocks when possible (v7x megacore)."""
    tr = 128
    while tr > 8 and tr * 2 > rows:
        tr //= 2
    return tr


def _gather_picked(inp2d, seq_flat):
    """picked[r] = inp2d[r, seq_flat[r]] via the targeted-DMA Pallas kernel."""
    rows, vocab = inp2d.shape
    slab_width = min(128, vocab)
    # Slab start containing the token; clamp so start + slab_width <= vocab.
    slab = jnp.minimum((seq_flat // slab_width) * slab_width,
                       vocab - slab_width).astype(jnp.int32)
    loc = (seq_flat - slab).astype(jnp.int32)

    tr = _pick_row_tile(rows)
    rows_pad = pl.cdiv(rows, tr) * tr
    if rows_pad != rows:
        pad = rows_pad - rows
        slab = jnp.pad(slab, (0, pad))
        loc = jnp.pad(loc, (0, pad))
    loc2d = loc.reshape(rows_pad, 1)

    itemsize = jnp.dtype(inp2d.dtype).itemsize
    cost = pl.CostEstimate(
        flops=2 * rows_pad * slab_width,
        transcendentals=0,
        bytes_accessed=rows_pad * (slab_width * itemsize + 2 * 4 + 4),
    )

    kernel = functools.partial(
        _targeted_gather_kernel,
        rows=rows, row_tile=tr, slab_width=slab_width,
        slab_aligned=(vocab % slab_width == 0),
    )

    picked = pl.pallas_call(
        kernel,
        out_shape=jax.ShapeDtypeStruct((rows_pad, 1), jnp.float32),
        grid_spec=pltpu.PrefetchScalarGridSpec(
            num_scalar_prefetch=1,
            grid=(rows_pad // tr,),
            in_specs=[
                pl.BlockSpec((tr, 1), lambda b, slab_ref: (b, 0)),   # loc
                pl.BlockSpec(memory_space=pl.ANY),                   # inp stays in HBM
            ],
            out_specs=pl.BlockSpec((tr, 1), lambda b, slab_ref: (b, 0)),
            scratch_shapes=[
                pltpu.VMEM((tr, slab_width), inp2d.dtype),
                pltpu.SemaphoreType.DMA,
            ],
        ),
        compiler_params=pltpu.CompilerParams(
            dimension_semantics=("parallel",),
            vmem_limit_bytes=32 * 1024 * 1024,
        ),
        cost_estimate=cost,
    )(slab, loc2d, inp2d)

    return picked[:rows, 0]


def reward_loss(inp, seq, reward, reduction="mean"):
    """inp: (N, L, V) log-probs (f32 or bf16); seq: (N, L) int; reward: (N, L)."""
    N, L, V = inp.shape
    if inp.dtype not in (jnp.float32, jnp.bfloat16):
        inp = inp.astype(jnp.float32)          # bf16 is consumed natively
    seq = seq.astype(jnp.int32)
    reward = reward.astype(jnp.float32)

    picked = _gather_picked(inp.reshape(N * L, V), seq.reshape(N * L))
    picked = picked.reshape(N, L)

    # Shifted mask (exactly the PyTorch concat): mask[:,0]=1, mask[:,l]=seq[:,l-1]>0.
    mask = jnp.concatenate(
        [jnp.ones((N, 1), jnp.float32), (seq[:, :-1] > 0).astype(jnp.float32)],
        axis=1)
    out = -picked * reward * mask

    if reduction == "none":
        return out.sum(1) / mask.sum(1)
    elif reduction == "mean":
        return jnp.sum(out) / jnp.sum(mask)
    else:
        # TODO(synk): PyTorch returns the un-reduced flat vector for other
        # reduction values; not needed for this port.
        raise ValueError(f"unsupported reduction: {reduction}")


def _reference(inp, seq, reward, reduction="mean"):
    """Plain-JAX reference mirroring the PyTorch forward."""
    inp = inp.astype(jnp.float32)
    picked = jnp.take_along_axis(inp, seq[..., None].astype(jnp.int32), axis=2)[..., 0]
    mask = jnp.concatenate(
        [jnp.ones((inp.shape[0], 1), jnp.float32),
         (seq[:, :-1] > 0).astype(jnp.float32)], axis=1)
    out = -picked * reward * mask
    if reduction == "none":
        return out.sum(1) / mask.sum(1)
    return jnp.sum(out) / jnp.sum(mask)


if __name__ == "__main__":
    key = jax.random.PRNGKey(0)
    k1, k2, k3, k4 = jax.random.split(key, 4)

    # Small shapes; rows = N*L = 128 -> 2 row-blocks of 64 (exercises the grid
    # and the v7x 'parallel' axis), V = 512 -> real slab selection.
    N, L, V = 4, 32, 512
    inp = jax.nn.log_softmax(jax.random.normal(k1, (N, L, V), jnp.float32), axis=-1)
    seq = jax.random.randint(k2, (N, L), 0, V, dtype=jnp.int32)
    # Sprinkle explicit zeros so the shifted mask is non-trivial.
    seq = jnp.where(jax.random.uniform(k4, (N, L)) < 0.25, 0, seq)
    reward = jax.random.normal(k3, (N, L), jnp.float32)

    out_mean = reward_loss(inp, seq, reward, reduction="mean")
    out_none = reward_loss(inp, seq, reward, reduction="none")
    jax.block_until_ready((out_mean, out_none))

    ref_mean = _reference(inp, seq, reward, "mean")
    ref_none = _reference(inp, seq, reward, "none")

    assert jnp.allclose(out_mean, ref_mean, atol=1e-4, rtol=1e-4), (out_mean, ref_mean)
    assert jnp.allclose(out_none, ref_none, atol=1e-4, rtol=1e-4), (out_none, ref_none)

    print("KERNEL_OK")
</pallas_src>

<mosaic_0001>
module attributes {stable_mosaic.version = 11 : i64} {
  func.func @_targeted_gather_kernel(%arg0: i32, %arg1: memref<128xi32, #tpu.memory_space<smem>>, %arg2: memref<64x1xi32, #tpu.memory_space<vmem>>, %arg3: memref<128x512xf32, #tpu.memory_space<any>>, %arg4: memref<64x1xf32, #tpu.memory_space<vmem>>, %arg5: memref<64x128xf32, #tpu.memory_space<vmem>>, %arg6: memref<!tpu.dma_semaphore, #tpu.memory_space<semaphore_mem>>) attributes {dimension_semantics = [#tpu.dimension_semantics<parallel>], iteration_bounds = array<i64: 2>, scalar_prefetch = 1 : i64, scratch_operands = 2 : i64, tpu.core_type = #tpu.core_type<tc>, window_params = [{transform_indices = @transform_0, window_bounds = array<i64: 64, 1>}, {}, {transform_indices = @transform_2, window_bounds = array<i64: 64, 1>}]} {
    %c64_i32 = arith.constant 64 : i32
    %0 = arith.muli %arg0, %c64_i32 : i32
    %c0_i32 = arith.constant 0 : i32
    %c64_i32_0 = arith.constant 64 : i32
    %1 = arith.addi %c0_i32, %c64_i32_0 : i32
    %c1_i32 = arith.constant 1 : i32
    scf.for %arg7 = %c0_i32 to %1 step %c1_i32  : i32 {
      %c1_i32_12 = arith.constant 1 : i32
      %13 = arith.muli %arg7, %c1_i32_12 : i32
      %c0_i32_13 = arith.constant 0 : i32
      %14 = arith.addi %c0_i32_13, %13 : i32
      %15 = arith.addi %0, %14 : i32
      %c127_i32 = arith.constant 127 : i32
      %16 = arith.minsi %15, %c127_i32 : i32
      %17 = arith.index_cast %15 : i32 to index
      %18 = memref.load %arg1[%17] : memref<128xi32, #tpu.memory_space<smem>>
      %19 = tpu.assume_multiple %18, 128 : i32
      %20 = tpu.memref_slice %arg3[%16, %19] : memref<128x512xf32, #tpu.memory_space<any>> -> memref<1x128xf32, #tpu.memory_space<any>>
      %c0_i32_14 = arith.constant 0 : i32
      %21 = tpu.memref_slice %arg5[%14, %c0_i32_14] : memref<64x128xf32, #tpu.memory_space<vmem>> -> memref<1x128xf32, #tpu.memory_space<vmem>>
      tpu.enqueue_dma source(%20 : memref<1x128xf32, #tpu.memory_space<any>>) target(%21 : memref<1x128xf32, #tpu.memory_space<vmem>>) target_semaphore(%arg6 : memref<!tpu.dma_semaphore, #tpu.memory_space<semaphore_mem>>)
    }
    %c64_i32_1 = arith.constant 64 : i32
    %c0_i32_2 = arith.constant 0 : i32
    %c64_i32_3 = arith.constant 64 : i32
    %2 = arith.addi %c0_i32_2, %c64_i32_3 : i32
    %c1_i32_4 = arith.constant 1 : i32
    scf.for %arg7 = %c0_i32_2 to %2 step %c1_i32_4  : i32 {
      %c1_i32_12 = arith.constant 1 : i32
      %13 = arith.muli %arg7, %c1_i32_12 : i32
      %c0_i32_13 = arith.constant 0 : i32
      %14 = arith.addi %c0_i32_13, %13 : i32
      %c0_i32_14 = arith.constant 0 : i32
      %c0_i32_15 = arith.constant 0 : i32
      %15 = tpu.memref_slice %arg3[%c0_i32_14, %c0_i32_15] : memref<128x512xf32, #tpu.memory_space<any>> -> memref<1x128xf32, #tpu.memory_space<any>>
      %c0_i32_16 = arith.constant 0 : i32
      %16 = tpu.memref_slice %arg5[%14, %c0_i32_16] : memref<64x128xf32, #tpu.memory_space<vmem>> -> memref<1x128xf32, #tpu.memory_space<vmem>>
      tpu.wait_dma2 semaphore(%arg6 : memref<!tpu.dma_semaphore, #tpu.memory_space<semaphore_mem>>) src(%15 : memref<1x128xf32, #tpu.memory_space<any>>) dst(%16 : memref<1x128xf32, #tpu.memory_space<vmem>>)
    }
    %c64_i32_5 = arith.constant 64 : i32
    %3 = tpu.iota {dimensions = array<i32: 1>} : vector<64x128xi32>
    %c0 = arith.constant 0 : index
    %c0_6 = arith.constant 0 : index
    %4 = vector.load %arg2[%c0, %c0_6] : memref<64x1xi32, #tpu.memory_space<vmem>>, vector<64x1xi32>
    %5 = vector.broadcast %4 : vector<64x1xi32> to vector<64x128xi32>
    %6 = arith.cmpi eq, %3, %5 : vector<64x128xi32>
    %c0_7 = arith.constant 0 : index
    %c0_8 = arith.constant 0 : index
    %7 = vector.load %arg5[%c0_7, %c0_8] : memref<64x128xf32, #tpu.memory_space<vmem>>, vector<64x128xf32>
    %cst = arith.constant 0.000000e+00 : f32
    %8 = vector.broadcast %cst : f32 to vector<64x128xf32>
    %9 = arith.select %6, %7, %8 : vector<64x128xi1>, vector<64x128xf32>
    %cst_9 = arith.constant dense<0.000000e+00> : vector<64xf32>
    %10 = vector.multi_reduction <add>, %9, %cst_9 [1] : vector<64x128xf32> to vector<64xf32>
    %11 = vector.shape_cast %10 : vector<64xf32> to vector<64x1xf32>
    %c0_10 = arith.constant 0 : index
    %c0_11 = arith.constant 0 : index
    %12 = vector.load %arg4[%c0_10, %c0_11] : memref<64x1xf32, #tpu.memory_space<vmem>>, vector<64x1xf32>
    tpu.vector_store %arg4[%c0_10, %c0_11], %11 {strides = array<i32>} : memref<64x1xf32, #tpu.memory_space<vmem>>, vector<64x1xf32>,
    return
  }
  func.func @transform_0(%arg0: i32, %arg1: memref<128xi32, #tpu.memory_space<smem>>) -> (i32, i32) {
    %c0_i32 = arith.constant 0 : i32
    %c0_i32_0 = arith.constant 0 : i32
    return %arg0, %c0_i32 : i32, i32
  }
  func.func @transform_2(%arg0: i32, %arg1: memref<128xi32, #tpu.memory_space<smem>>) -> (i32, i32) {
    %c0_i32 = arith.constant 0 : i32
    %c0_i32_0 = arith.constant 0 : i32
    return %arg0, %c0_i32 : i32, i32
  }
}

</mosaic_0001>

<llo_original>
// kernel: tpu_custom_call.1
$region0: #{tpu_custom_call.1}
  #allocation0 [shape = 'u32[]', space=smem, size = 0x4, offset = 0x4, fixed_abs, tag = 'smem constant byte address 0x4 - core index']
  #allocation1 [shape = 'u32[144,128]{1,0:T(1,128)}', space=vmem, size = 0x12000, scoped, tag = 'internal scratch']
  #allocation2 [shape = 'f32[64,128]{1,0:T(8,128)}', space=vmem, size = 0x8000, scoped, tag = 'scratch operand']
  #allocation3 [shape = 's32[1]{0}', space=sflag, size = 0x4, scoped, tag = 'scratch operand']
  #allocation4 [shape = 's32[1]{0}', space=sflag, size = 0x4, scoped, tag = 'scoped memory for tpu_custom_call.1']
  #allocation5 [shape = 'u8[512]{0}', space=smem, size = 0x200, scoped, tag = 'prefetched SMEM operand 0']
  #allocation6 [shape = 's32[]', space=sflag, size = 0x4, offset = 0, fixed_abs, tag = 'sflag constant byte address 0x0 - dummy sync flag']
  #allocation7 [shape = 's32[]', space=sflag, size = 0x4, offset = 0, fixed_abs, tag = 'sflag constant byte address 0x0 - dummy sync flag']
  #allocation8 [shape = 'u32[]', space=smem, size = 0x4, offset = 0x44, fixed_abs, tag = 'smem constant byte address 0x44 - assertion arg 0']
  #allocation9 [shape = 'u32[]', space=smem, size = 0x4, offset = 0x48, fixed_abs, tag = 'smem constant byte address 0x48 - assertion arg 1']
  %s0 = inlined_call_operand.vmem [shape: s32[128], index: 0, kind: input, shape index: {}]
  %s1 = inlined_call_operand.vmem [shape: s32[128,1], index: 1, kind: input, shape index: {}]
  %s2 = inlined_call_operand.hbm [shape: f32[128,512], index: 2, kind: input, shape index: {}]
  %s3 = inlined_call_operand.vmem [shape: f32[128,1], index: 3, kind: output, shape index: {}]
  %s4 = sld [smem:[#allocation0]]
  $region55: #{tpu_custom_call.1} parent=0
    _
  %s6 = ssub.s32 1, %s4
  %s7 = scalar_select 0, %s6, %s4
  %s8 = sshll.u32 %s0, 4
  %s9 = int_to_ptr.vmem [resolvable:$true] %s8
  %11 = dma.vmem_to_smem %s9, 16, [#allocation5], [#allocation4]
  %12 = dma.done [#allocation4], 16
  %13 = sfence
  loop: start=0, step=1, limit=4
  $region2: #{tpu_custom_call.1} parent=0 // loop_pre_header
    _
  $region3: #{tpu_custom_call.1} parent=0 // loop_header
    %s15 = sphi 0, %s19
    %p16 = scmp.ge.s32.totalorder %s15, 4
    %s25 = sphi 0, %s27
    %s28 = sphi 0, %s25
    %s29 = sphi 0, %s28
    %s45 = sphi 0, %s29
    %s51 = sphi 0, %s53
    %s54 = sphi 0, %s51
    %s55 = sphi 0, %s54
    %s71 = sphi 0, %s55
  $region4: #{tpu_custom_call.1} parent=0 // loop_header_branch
    %18 = sbr.rel (%p16) target = $region8
  $region5: #{tpu_custom_call.1} parent=0 // loop_body
    %s20 = ssub.s32 %s15, 1
    %s21 = ssub.s32 %s15, 2
    %s22 = sadd.s32 %s15, 1
    %s23 = ssub.s32 %s15, %s22
    %p24 = scmp.eq.s32.totalorder %s23, 0
    %s26 = sadd.s32 %s25, 1
    %s27 = scalar_select %p24, %s25, %s26
    %p30 = pneg %p24
    %p31 = scmp.eq.s32.totalorder %s15, 1
    %p32 = por %p30, %p31
    %p33 = scmp.ne.s32.totalorder %s25, %s28
    %p34 = scmp.eq.s32.totalorder %s15, 0
    %p35 = por %p33, %p34
    %p36 = scmp.ne.s32.totalorder %s25, %s28
    %p37 = scmp.eq.s32.totalorder %s20, 1
    %p38 = por %p36, %p37
    %p39 = scmp.ne.s32.totalorder %s28, %s29
    %p40 = scmp.eq.s32.totalorder %s20, 0
    %p41 = por %p39, %p40
    %p42 = scmp.ne.s32.totalorder %s28, %s29
    %p43 = scmp.eq.s32.totalorder %s21, 1
    %p44 = por %p42, %p43
    %p46 = scmp.ne.s32.totalorder %s29, %s45
    %p47 = scmp.eq.s32.totalorder %s21, 0
    %p48 = por %p46, %p47
    %s49 = ssub.s32 %s15, %s22
    %p50 = scmp.eq.s32.totalorder %s49, 0
    %s52 = sadd.s32 %s51, 1
    %s53 = scalar_select %p50, %s51, %s52
    %p56 = pneg %p50
    %p57 = scmp.eq.s32.totalorder %s15, 1
    %p58 = por %p56, %p57
    %p59 = scmp.ne.s32.totalorder %s51, %s54
    %p60 = scmp.eq.s32.totalorder %s15, 0
    %p61 = por %p59, %p60
    %p62 = scmp.ne.s32.totalorder %s51, %s54
    %p63 = scmp.eq.s32.totalorder %s20, 1
    %p64 = por %p62, %p63
    %p65 = scmp.ne.s32.totalorder %s54, %s55
    %p66 = scmp.eq.s32.totalorder %s20, 0
    %p67 = por %p65, %p66
    %p68 = scmp.ne.s32.totalorder %s54, %s55
    %p69 = scmp.eq.s32.totalorder %s21, 1
    %p70 = por %p68, %p69
    %p72 = scmp.ne.s32.totalorder %s55, %s71
    %p73 = scmp.eq.s32.totalorder %s21, 0
    %p74 = por %p72, %p73
    %p75 = scmp.le.s32.totalorder 1, %s15
    %p76 = scmp.lt.s32.totalorder %s15, 3
    %p77 = pnand %p75, %p76
    %p78 = pneg %p77
    // Predicated region
    $region9: #{tpu_custom_call.1} parent=5 // pred_check
      _
    $region10: #{tpu_custom_call.1} parent=5 // pred_check_branch
      %80 = sbr.rel (%p77) target = $region12
    $region11: #{tpu_custom_call.1} parent=5 // pred_region
      %s81 = ssub.s32 %s15, 1
    $region12: #{tpu_custom_call.1} parent=5 // pred_fallthru
      _
    %p82 = scmp.lt.s32.totalorder %s15, 2
    // Predicated region
    $region13: #{tpu_custom_call.1} parent=5 // pred_check
      %p83 = pneg %p82
    $region14: #{tpu_custom_call.1} parent=5 // pred_check_branch
      %85 = sbr.rel (%p83) target = $region16
    $region15: #{tpu_custom_call.1} parent=5 // pred_region
      // Predicated region
      $region17: #{tpu_custom_call.1} parent=15 // pred_check
        %p86 = pneg %p35
      $region18: #{tpu_custom_call.1} parent=15 // pred_check_branch
        %88 = sbr.rel (%p86) target = $region20
      $region19: #{tpu_custom_call.1} parent=15 // pred_region
        %s89 = smul.u32 8, %s15
        %p90 = scmp.lt.s32.totalorder %s89, 15
        %s91 = scalar_select %p90, %s89, 15
        %s92 = smul.addr %s91, 8
        %s93 = scalar_lea.vmem %s1, %s92
        %s94 = smul.u32 8, %s15
      $region20: #{tpu_custom_call.1} parent=15 // pred_fallthru
        _
    $region16: #{tpu_custom_call.1} parent=5 // pred_fallthru
      _
    %p95 = scmp.le.s32.totalorder 1, %s15
    %p96 = scmp.lt.s32.totalorder %s15, 3
    %p97 = pnand %p95, %p96
    %p98 = pneg %p97
    // Predicated region
    $region21: #{tpu_custom_call.1} parent=5 // pred_check
      _
    $region22: #{tpu_custom_call.1} parent=5 // pred_check_branch
      %100 = sbr.rel (%p97) target = $region24
    $region23: #{tpu_custom_call.1} parent=5 // pred_region
      %s101 = ssub.s32 %s15, 1
      %s102 = smul.u32 8, %s20
      %p103 = scmp.lt.s32.totalorder %s102, 15
      %s104 = scalar_select %p103, %s102, 15
      %s105 = smul.addr %s104, 8
      %s106 = scalar_lea.vmem %s1, %s105
      %p107 = pneg %p41
      %p108 = pneg %p38
      %p109 = pneg %p67
      %p110 = pneg %p64
      %s111 = smul.u32 8, %s20
      %p112 = scmp.lt.s32.totalorder %s111, 15
      %s113 = scalar_select %p112, %s111, 15
      %s114 = smul.addr %s113, 8
      %s115 = scalar_lea.vmem %s3, %s114
      %s116 = smul.u32 8, %s20
      %p117 = scmp.lt.s32.totalorder %s116, 15
      %s118 = scalar_select %p117, %s116, 15
      %s119 = smul.addr %s118, 8
      %s120 = scalar_lea.vmem %s1, %s119
      %s121 = smul.u32 8, %s20
      %s122 = smul.u32 8, %s20
      %p123 = scmp.lt.s32.totalorder %s122, 15
      %s124 = scalar_select %p123, %s122, 15
      %s125 = smul.addr %s124, 8
      %s126 = scalar_lea.vmem %s3, %s125
      %s127 = smul.u32 8, %s20
      %s128 = smul.u32 %s20, 64
      loop: start=0, step=1, limit=64
      $region25: #{tpu_custom_call.1} parent=23 // loop_pre_header
        _
      $region26: #{tpu_custom_call.1} parent=23 // loop_header
        %s130 = sphi 0, %s134
        %p131 = scmp.ge.s32.totalorder %s130, 64
      $region27: #{tpu_custom_call.1} parent=23 // loop_header_branch
        %133 = sbr.rel (%p131) target = $region31
      $region28: #{tpu_custom_call.1} parent=23 // loop_body
        %s135 = sadd.s32 %s128, %s130
        %p136 = scmp.lt.s32.totalorder %s135, 127
        %s137 = scalar_select %p136, %s135, 127
        %s138 = sld [smem:[#allocation5 + %s135]]
        %s139 = sshrl.u32 %s137, 3
        %s140 = sand.u32 %s137, 7
        %s141 = smul.u32 %s139, 32
        %s142 = sadd.s32 %s140, %s141
        %s143 = sshra.s32 %s138, 7
        %s144 = sand.u32 %s138, 127
        %s145 = smul.u32 %s143, 8
        %s146 = sadd.s32 %s145, %s142
        %s147 = smul.addr %s146, 16
        %s148 = scalar_lea.hbm %s2, %s147
        %s149 = scalar_lea.vmem [#allocation2], %s130
        // Predicated region
        $region32: #{tpu_custom_call.1} parent=28 // pred_check
          _
        $region33: #{tpu_custom_call.1} parent=28 // pred_check_branch
          %151 = sbr.rel target = $region35
        $region34: #{tpu_custom_call.1} parent=28 // pred_region
          %152 = sst [smem:[#allocation8]] [#allocation7]
          %153 = sst [smem:[#allocation9]] [#allocation6]
        $region35: #{tpu_custom_call.1} parent=28 // pred_fallthru
          _
        %155 = shalt.err (0)
        %s157 = sshll.u32 %s149, 4
        %s158 = int_to_ptr.vmem [resolvable:$true] %s157
        %160 = dma.hbm_to_vmem [thread:$0]  %s148, 16, %s158, [#allocation3]
      $region29: #{tpu_custom_call.1} parent=23 // loop_footer
        %s134 = sadd.s32 1, %s130
      $region30: #{tpu_custom_call.1} parent=23 // loop_footer_branch
        %129 = sbr.rel target = $region26
      $region31: #{tpu_custom_call.1} parent=23 // loop_exit
        _
      loop: start=0, step=1, limit=64
      $region36: #{tpu_custom_call.1} parent=23 // loop_pre_header
        _
      $region37: #{tpu_custom_call.1} parent=23 // loop_header
        %s162 = sphi 0, %s166
        %p163 = scmp.ge.s32.totalorder %s162, 64
      $region38: #{tpu_custom_call.1} parent=23 // loop_header_branch
        %165 = sbr.rel (%p163) target = $region42
      $region39: #{tpu_custom_call.1} parent=23 // loop_body
        %s167 = smul.u32 1, 1
        %s168 = sshll.u32 %s167, 4
        %169 = dma.done [#allocation3], %s168
      $region40: #{tpu_custom_call.1} parent=23 // loop_footer
        %s166 = sadd.s32 1, %s162
      $region41: #{tpu_custom_call.1} parent=23 // loop_footer_branch
        %161 = sbr.rel target = $region37
      $region42: #{tpu_custom_call.1} parent=23 // loop_exit
        _
      %v170 = vlaneseq
      %v171 = vand.u32 %v170, 127
      %v172 = vld [vmem:[%s120] sm:$0xff]
      %v173 = vld [vmem:[%s120 + $0x8] sm:$0xff]
      %v174 = vld [vmem:[%s120 + $0x10] sm:$0xff]
      %v175 = vld [vmem:[%s120 + $0x18] sm:$0xff]
      %v176 = vld [vmem:[%s120 + $0x20] sm:$0xff]
      %v177 = vld [vmem:[%s120 + $0x28] sm:$0xff]
      %v178 = vld [vmem:[%s120 + $0x30] sm:$0xff]
      %v179 = vld [vmem:[%s120 + $0x38] sm:$0xff]
      %180 = vset.pattern.permute.xlu0 0
      %181 = vperm.xlu0 %180, %v172
      %v182 = vpop.permute.xlu0 %181
      %183 = vset.pattern.permute.xlu0 0
      %184 = vperm.xlu0 %183, %v173
      %v185 = vpop.permute.xlu0 %184
      %186 = vset.pattern.permute.xlu0 0
      %187 = vperm.xlu0 %186, %v174
      %v188 = vpop.permute.xlu0 %187
      %189 = vset.pattern.permute.xlu0 0
      %190 = vperm.xlu0 %189, %v175
      %v191 = vpop.permute.xlu0 %190
      %192 = vset.pattern.permute.xlu0 0
      %193 = vperm.xlu0 %192, %v176
      %v194 = vpop.permute.xlu0 %193
      %195 = vset.pattern.permute.xlu0 0
      %196 = vperm.xlu0 %195, %v177
      %v197 = vpop.permute.xlu0 %196
      %198 = vset.pattern.permute.xlu0 0
      %199 = vperm.xlu0 %198, %v178
      %v200 = vpop.permute.xlu0 %199
      %201 = vset.pattern.permute.xlu0 0
      %202 = vperm.xlu0 %201, %v179
      %v203 = vpop.permute.xlu0 %202
      %vm204 = vcmp.eq.s32.totalorder %v171, %v182
      %vm205 = vcmp.eq.s32.totalorder %v171, %v185
      %vm206 = vcmp.eq.s32.totalorder %v171, %v188
      %vm207 = vcmp.eq.s32.totalorder %v171, %v191
      %vm208 = vcmp.eq.s32.totalorder %v171, %v194
      %vm209 = vcmp.eq.s32.totalorder %v171, %v197
      %vm210 = vcmp.eq.s32.totalorder %v171, %v200
      %vm211 = vcmp.eq.s32.totalorder %v171, %v203
      %v212 = vld [vmem:[#allocation2] sm:$0xff]
      %v213 = vld [vmem:[#allocation2 + $0x8] sm:$0xff]
      %v214 = vld [vmem:[#allocation2 + $0x10] sm:$0xff]
      %v215 = vld [vmem:[#allocation2 + $0x18] sm:$0xff]
      %v216 = vld [vmem:[#allocation2 + $0x20] sm:$0xff]
      %v217 = vld [vmem:[#allocation2 + $0x28] sm:$0xff]
      %v218 = vld [vmem:[#allocation2 + $0x30] sm:$0xff]
      %v219 = vld [vmem:[#allocation2 + $0x38] sm:$0xff]
      %v220 = vsel %vm204, %v212, 0.0
      %v221 = vsel %vm205, %v213, 0.0
      %v222 = vsel %vm206, %v214, 0.0
      %v223 = vsel %vm207, %v215, 0.0
      %v224 = vsel %vm208, %v216, 0.0
      %v225 = vsel %vm209, %v217, 0.0
      %v226 = vsel %vm210, %v218, 0.0
      %v227 = vsel %vm211, %v219, 0.0
      %228 = vadd.xlane.f32.xlu0 %v220
      %v229 = vpop.xlane.xlu0 %228
      %230 = vadd.xlane.f32.xlu0 %v221
      %v231 = vpop.xlane.xlu0 %230
      %232 = vadd.xlane.f32.xlu0 %v222
      %v233 = vpop.xlane.xlu0 %232
      %234 = vadd.xlane.f32.xlu0 %v223
      %v235 = vpop.xlane.xlu0 %234
      %236 = vadd.xlane.f32.xlu0 %v224
      %v237 = vpop.xlane.xlu0 %236
      %238 = vadd.xlane.f32.xlu0 %v225
      %v239 = vpop.xlane.xlu0 %238
      %240 = vadd.xlane.f32.xlu0 %v226
      %v241 = vpop.xlane.xlu0 %240
      %242 = vadd.xlane.f32.xlu0 %v227
      %v243 = vpop.xlane.xlu0 %242
      %vm244 = vcmask 7168
      %245 = vst.msk [vmem:[%s126] sm:$0xff] %vm244, %v229
      %246 = vst.msk [vmem:[%s126 + $0x8] sm:$0xff] %vm244, %v231
      %247 = vst.msk [vmem:[%s126 + $0x10] sm:$0xff] %vm244, %v233
      %248 = vst.msk [vmem:[%s126 + $0x18] sm:$0xff] %vm244, %v235
      %249 = vst.msk [vmem:[%s126 + $0x20] sm:$0xff] %vm244, %v237
      %250 = vst.msk [vmem:[%s126 + $0x28] sm:$0xff] %vm244, %v239
      %251 = vst.msk [vmem:[%s126 + $0x30] sm:$0xff] %vm244, %v241
      %252 = vst.msk [vmem:[%s126 + $0x38] sm:$0xff] %vm244, %v243
      %s253 = smul.u32 8, %s20
      %p254 = scmp.lt.s32.totalorder %s253, 15
      %s255 = scalar_select %p254, %s253, 15
      %s256 = smul.addr %s255, 8
      %s257 = scalar_lea.vmem %s3, %s256
      // Predicated region
      $region43: #{tpu_custom_call.1} parent=23 // pred_check
        %p258 = pneg %p64
      $region44: #{tpu_custom_call.1} parent=23 // pred_check_branch
        %260 = sbr.rel (%p258) target = $region46
      $region45: #{tpu_custom_call.1} parent=23 // pred_region
        %s261 = smul.u32 8, %s20
      $region46: #{tpu_custom_call.1} parent=23 // pred_fallthru
        _
    $region24: #{tpu_custom_call.1} parent=5 // pred_fallthru
      _
    %p262 = scmp.le.s32.totalorder 2, %s15
    // Predicated region
    $region47: #{tpu_custom_call.1} parent=5 // pred_check
      %p263 = pneg %p262
    $region48: #{tpu_custom_call.1} parent=5 // pred_check_branch
      %265 = sbr.rel (%p263) target = $region50
    $region49: #{tpu_custom_call.1} parent=5 // pred_region
      %s266 = ssub.s32 %s15, 2
      // Predicated region
      $region51: #{tpu_custom_call.1} parent=49 // pred_check
        %p267 = pneg %p70
      $region52: #{tpu_custom_call.1} parent=49 // pred_check_branch
        %269 = sbr.rel (%p267) target = $region54
      $region53: #{tpu_custom_call.1} parent=49 // pred_region
        %s270 = smul.u32 8, %s21
        %p271 = scmp.lt.s32.totalorder %s270, 15
        %s272 = scalar_select %p271, %s270, 15
        %s273 = smul.addr %s272, 8
        %s274 = scalar_lea.vmem %s3, %s273
      $region54: #{tpu_custom_call.1} parent=49 // pred_fallthru
        _
    $region50: #{tpu_custom_call.1} parent=5 // pred_fallthru
      _
  $region6: #{tpu_custom_call.1} parent=0 // loop_footer
    %s19 = sadd.s32 1, %s15
  $region7: #{tpu_custom_call.1} parent=0 // loop_footer_branch
    %14 = sbr.rel target = $region3
  $region8: #{tpu_custom_call.1} parent=0 // loop_exit
    _
  %275 = vsyncmov [#allocation3]
  %s276 = vpop.sfrf %275
  %p277 = scmp.eq.s32.totalorder %s276, 0
  %p278 = pneg %p277
  %280 = shalt.err (%p278)

</llo_original>
